<compile_context>
chip_gen: v5e
topology: v5e:2x2
jax: 0.10.0
libtpu: 0.0.40
codegen_flags: <defaults>
</compile_context>

<pallas_src>
import jax
import jax.numpy as jnp
from jax.experimental import pallas as pl
from jax.experimental.pallas import tpu as pltpu


def _round_up(x: int, m: int) -> int:
    return ((x + m - 1) // m) * m


def _cdiv(a: int, b: int) -> int:
    return -(-a // b)


def mlp_decoder_kernel(x_ref, w1_ref, bw_ref, b2_ref, o_ref):
    # x_ref : [TB, INp] f32   batch tile (cast to bf16 here, on the VPU)
    # w1_ref: [INp, Hp] bf16  grid-invariant, VMEM resident across tiles
    # bw_ref: [2, Hp]   f32   row 0 = b1, row 1 = w2 (merged block)
    # b2_ref: [1, 1]    f32   scalar in SMEM
    # o_ref : [1, TB]   f32   lane-dense output row (batch on lanes)
    x = x_ref[...].astype(jnp.bfloat16)
    h = jnp.dot(x, w1_ref[...], preferred_element_type=jnp.float32)   # MXU
    h = jnp.maximum(h + bw_ref[0:1, :], 0.0)                          # VPU
    # N=1 head: VPU multiply + XLU lane reduction, stored lane-dense.
    y = jnp.sum(h * bw_ref[1:2, :], axis=-1)                          # (TB,)
    o_ref[0, :] = (y + b2_ref[0, 0]).astype(o_ref.dtype)


def mlp_decoder(x, w1, bw, b2, *, block_b: int = 1024):
    """x: [B, INp] f32, w1: [INp, Hp] bf16, bw: [2, Hp] f32 (b1; w2 row),
    b2: [1, 1] f32  ->  [B, 1] f32."""
    B, inp = x.shape
    inp_w, hp = w1.shape
    assert inp == inp_w, "x feature dim must match w1 rows"
    assert bw.shape == (2, hp)

    w1_bytes = inp * hp * w1.dtype.itemsize
    bw_bytes = 2 * hp * 4

    def _vmem_need(tb):
        # x tile, weights, merged bias/head, out row — all double-buffered.
        # TODO(synk): single-buffer the grid-invariant weight blocks
        # (pipeline_mode=pl.Buffered(1)) once that path is settled.
        return 2 * (tb * inp * 4 + w1_bytes + bw_bytes + tb * 4)

    # --- batch tiling -------------------------------------------------------
    if B <= 128:
        TB = B                      # single full-array tile (no (8,128) rule)
    else:
        # >=2 tiles so both v7x TensorCores get work; the lane-dense output
        # block requires TB % 128 == 0 whenever the grid has more than one
        # step (handles non-multiple-of-16 block_b values too).
        TB = min(_round_up(block_b, 128), max(128, _round_up(_cdiv(B, 2), 128)))
        budget = 56 * 1024 * 1024
        while TB > 128 and _vmem_need(TB) > budget:
            TB -= 128
    n_tiles = _cdiv(B, TB)          # partial last tile allowed: no batch pad

    vmem_limit = int(min(64 << 20, max(32 << 20, _vmem_need(TB) + (4 << 20))))

    cost = pl.CostEstimate(
        flops=2 * B * inp * hp + 3 * B * hp,
        transcendentals=0,
        bytes_accessed=B * inp * 4 + w1_bytes + bw_bytes + B * 4 + 4,
    )

    out = pl.pallas_call(
        mlp_decoder_kernel,
        out_shape=jax.ShapeDtypeStruct((1, B), jnp.float32),
        grid=(n_tiles,),
        in_specs=[
            pl.BlockSpec((TB, inp), lambda i: (i, 0)),            # x tiles
            pl.BlockSpec((inp, hp), lambda i: (0, 0)),            # W1 resident
            pl.BlockSpec((2, hp), lambda i: (0, 0)),              # b1 + w2 row
            pl.BlockSpec((1, 1), lambda i: (0, 0),
                         memory_space=pltpu.MemorySpace.SMEM),    # b2 scalar
        ],
        out_specs=pl.BlockSpec((1, TB), lambda i: (0, i)),        # lane-dense
        compiler_params=pltpu.CompilerParams(
            dimension_semantics=("parallel",),   # shard batch across TCs (v7x)
            vmem_limit_bytes=vmem_limit,
        ),
        cost_estimate=cost,
    )(x, w1, bw, b2)
    return out.reshape(B, 1)


class PallasMLPDecoder:
    """Concrete neural decoder matching the BaseNeuralDecoder interface."""

    def __init__(self, input_size: int, hidden_size: int, key):
        self.input_size = input_size
        self.hidden_size = hidden_size
        # Feature (K) dim lane-aligned to 128; hidden (N) dim aligned to 256
        # when large enough to matter on v6e/v7x's 2x256x256 MXU.
        self.input_size_p = _round_up(input_size, 128)
        self.hidden_size_p = _round_up(hidden_size,
                                       256 if hidden_size > 128 else 128)

        k1, k2, k3, k4 = jax.random.split(key, 4)
        w1 = jax.random.normal(k1, (input_size, hidden_size), jnp.float32) * (
            2.0 / input_size) ** 0.5
        b1 = jax.random.normal(k2, (1, hidden_size), jnp.float32) * 0.01
        w2 = jax.random.normal(k3, (1, hidden_size), jnp.float32) * (
            2.0 / hidden_size) ** 0.5
        b2 = jax.random.normal(k4, (1, 1), jnp.float32) * 0.01

        pad_in = self.input_size_p - input_size
        pad_h = self.hidden_size_p - hidden_size
        # Zero pads contribute exactly 0 through the ReLU and head reduction.
        self.w1 = jnp.pad(w1, ((0, pad_in), (0, pad_h))).astype(jnp.bfloat16)
        b1p = jnp.pad(b1, ((0, 0), (0, pad_h)))
        w2p = jnp.pad(w2, ((0, 0), (0, pad_h)))
        self.bw = jnp.concatenate([b1p, w2p], axis=0)     # [2, Hp] f32
        self.b2 = b2                                       # [1, 1] f32 scalar

    @property
    def model_type(self) -> str:
        return "MLP"

    @property
    def input_shape_info(self) -> str:
        return f"[batch_size, {self.input_size}]"

    def get_num_parameters(self) -> int:
        # Logical (unpadded) parameter count, matching the nn.Module contract.
        return (self.input_size * self.hidden_size + self.hidden_size
                + self.hidden_size + 1)

    def get_model_info(self) -> dict:
        return {"model_type": self.model_type,
                "num_parameters": self.get_num_parameters(),
                "expected_input_shape": self.input_shape_info}

    def forward(self, x):
        # x: [batch_size, input_size] f32  ->  [batch_size, 1] f32
        B, f = x.shape
        assert f == self.input_size
        if self.input_size_p != f:
            # Single fused pad pass; no separate bf16 cast pass (the cast is
            # done in-kernel on the VPU).
            x = jnp.pad(x, ((0, 0), (0, self.input_size_p - f)))
        return mlp_decoder(x, self.w1, self.bw, self.b2)


if __name__ == "__main__":
    key = jax.random.PRNGKey(0)
    k_param, k_data = jax.random.split(key)

    batch_size, input_size, hidden_size = 2, 32, 64
    model = PallasMLPDecoder(input_size, hidden_size, k_param)

    x = jax.random.normal(k_data, (batch_size, input_size), jnp.float32)

    y = model.forward(x)
    y = jax.block_until_ready(y)

    # Reference in plain JAX (using the bf16-rounded weights/inputs the MXU
    # sees, f32 accumulation).
    w1_log = model.w1[:input_size, :hidden_size].astype(jnp.float32)
    b1_log = model.bw[0:1, :hidden_size]
    w2_log = model.bw[1:2, :hidden_size]
    x_bf = x.astype(jnp.bfloat16).astype(jnp.float32)
    h_ref = jnp.maximum(x_bf @ w1_log + b1_log, 0.0)
    y_ref = jnp.sum(h_ref * w2_log, axis=-1, keepdims=True) + model.b2

    assert y.shape == (batch_size, 1)
    assert jnp.allclose(y, y_ref, atol=1e-3, rtol=1e-3)

    print("KERNEL_OK")
</pallas_src>

<mosaic_0001>
module attributes {stable_mosaic.version = 11 : i64} {
  func.func @mlp_decoder_kernel(%arg0: i32, %arg1: memref<2x128xf32, #tpu.memory_space<vmem>>, %arg2: memref<128x128xbf16, #tpu.memory_space<vmem>>, %arg3: memref<2x128xf32, #tpu.memory_space<vmem>>, %arg4: memref<1x1xf32, #tpu.memory_space<smem>>, %arg5: memref<1x2xf32, #tpu.memory_space<vmem>>) attributes {dimension_semantics = [#tpu.dimension_semantics<parallel>], iteration_bounds = array<i64: 1>, scalar_prefetch = 0 : i64, scratch_operands = 0 : i64, tpu.core_type = #tpu.core_type<tc>, window_params = [{transform_indices = @transform_0, window_bounds = array<i64: 2, 128>}, {pipeline_mode = #tpu.pipeline_mode<synchronous>, transform_indices = @transform_1, window_bounds = array<i64: 128, 128>}, {pipeline_mode = #tpu.pipeline_mode<synchronous>, transform_indices = @transform_2, window_bounds = array<i64: 2, 128>}, {transform_indices = @transform_3, window_bounds = array<i64: 1, 1>}, {transform_indices = @transform_4, window_bounds = array<i64: 1, 2>}]} {
    %c0 = arith.constant 0 : index
    %c0_0 = arith.constant 0 : index
    %0 = vector.load %arg1[%c0, %c0_0] : memref<2x128xf32, #tpu.memory_space<vmem>>, vector<2x128xf32>
    %1 = arith.truncf %0 : vector<2x128xf32> to vector<2x128xbf16>
    %c0_1 = arith.constant 0 : index
    %c0_2 = arith.constant 0 : index
    %2 = vector.load %arg2[%c0_1, %c0_2] : memref<128x128xbf16, #tpu.memory_space<vmem>>, vector<128x128xbf16>
    %cst = arith.constant dense<0.000000e+00> : vector<2x128xf32>
    %3 = tpu.matmul %1, %2, %cst {dimension_numbers = #tpu.dot_dimension_numbers<[1], [0], [0], [1], [0, 0, 1, 1], [], []>} : vector<2x128xbf16>, vector<128x128xbf16>, vector<2x128xf32> -> vector<2x128xf32>
    %c0_3 = arith.constant 0 : index
    %c0_4 = arith.constant 0 : index
    %4 = vector.load %arg3[%c0_3, %c0_4] : memref<2x128xf32, #tpu.memory_space<vmem>>, vector<1x128xf32>
    %5 = vector.broadcast %4 : vector<1x128xf32> to vector<2x128xf32>
    %6 = arith.addf %3, %5 : vector<2x128xf32>
    %cst_5 = arith.constant 0.000000e+00 : f32
    %7 = vector.broadcast %cst_5 : f32 to vector<2x128xf32>
    %8 = arith.maximumf %6, %7 : vector<2x128xf32>
    %c1 = arith.constant 1 : index
    %c0_6 = arith.constant 0 : index
    %9 = vector.load %arg3[%c1, %c0_6] : memref<2x128xf32, #tpu.memory_space<vmem>>, vector<1x128xf32>
    %10 = vector.broadcast %9 : vector<1x128xf32> to vector<2x128xf32>
    %11 = arith.mulf %8, %10 : vector<2x128xf32>
    %cst_7 = arith.constant dense<0.000000e+00> : vector<2xf32>
    %12 = vector.multi_reduction <add>, %11, %cst_7 [1] : vector<2x128xf32> to vector<2xf32>
    %c0_8 = arith.constant 0 : index
    %c0_9 = arith.constant 0 : index
    %13 = memref.load %arg4[%c0_8, %c0_9] : memref<1x1xf32, #tpu.memory_space<smem>>
    %14 = vector.broadcast %13 : f32 to vector<2xf32>
    %15 = arith.addf %12, %14 : vector<2xf32>
    %c0_10 = arith.constant 0 : index
    %c0_11 = arith.constant 0 : index
    %16 = vector.load %arg5[%c0_10, %c0_11] : memref<1x2xf32, #tpu.memory_space<vmem>>, vector<1x2xf32>
    %17 = vector.shape_cast %16 : vector<1x2xf32> to vector<2xf32>
    %18 = vector.shape_cast %15 : vector<2xf32> to vector<1x2xf32>
    tpu.vector_store %arg5[%c0_10, %c0_11], %18 {strides = array<i32>} : memref<1x2xf32, #tpu.memory_space<vmem>>, vector<1x2xf32>,
    return
  }
  func.func @transform_0(%arg0: i32) -> (i32, i32) {
    %c0_i32 = arith.constant 0 : i32
    %c0_i32_0 = arith.constant 0 : i32
    return %arg0, %c0_i32 : i32, i32
  }
  func.func @transform_1(%arg0: i32) -> (i32, i32) {
    %c0_i32 = arith.constant 0 : i32
    %c0_i32_0 = arith.constant 0 : i32
    %c0_i32_1 = arith.constant 0 : i32
    return %c0_i32, %c0_i32_0 : i32, i32
  }
  func.func @transform_2(%arg0: i32) -> (i32, i32) {
    %c0_i32 = arith.constant 0 : i32
    %c0_i32_0 = arith.constant 0 : i32
    %c0_i32_1 = arith.constant 0 : i32
    return %c0_i32, %c0_i32_0 : i32, i32
  }
  func.func @transform_3(%arg0: i32) -> (i32, i32) {
    %c0_i32 = arith.constant 0 : i32
    %c0_i32_0 = arith.constant 0 : i32
    %c0_i32_1 = arith.constant 0 : i32
    return %c0_i32, %c0_i32_0 : i32, i32
  }
  func.func @transform_4(%arg0: i32) -> (i32, i32) {
    %c0_i32 = arith.constant 0 : i32
    %c0_i32_0 = arith.constant 0 : i32
    return %c0_i32, %arg0 : i32, i32
  }
}

</mosaic_0001>

<llo_original>
// kernel: tpu_custom_call.1
$region0: #{tpu_custom_call.1}
  #allocation0 [shape = 'u32[]', space=smem, size = 0x4, offset = 0x4, fixed_abs, tag = 'smem constant byte address 0x4 - core index']
  #allocation1 [shape = 'u32[72,128]{1,0:T(1,128)}', space=vmem, size = 0x9000, scoped, tag = 'internal scratch']
  #allocation2 [shape = 'f32[1,1]{1,0:T(1,128)S(6)}', space=smem, size = 0x200, scoped, tag = 'scoped memory for tpu_custom_call.1']
  %s0 = inlined_call_operand.vmem [shape: f32[2,128], index: 0, kind: input, shape index: {}]
  %s1 = inlined_call_operand.hbm [shape: bf16[128,128], index: 1, kind: input, shape index: {}]
  %s2 = inlined_call_operand.hbm [shape: f32[2,128], index: 2, kind: input, shape index: {}]
  %s3 = inlined_call_operand.<no memory space> [shape: f32[1,1], index: 3, kind: input, shape index: {}]
  %s4 = inlined_call_operand.hbm [shape: f32[1,2], index: 4, kind: output, shape index: {}]
  %s5 = sld [smem:[#allocation0]]
  $region34: #{tpu_custom_call.1} parent=0
    _
  %s7 = ssub.s32 1, %s5
  %s8 = scalar_select 0, %s7, %s5
  %9 = sst [smem:[#allocation2]] %s3
  $region1: #{tpu_custom_call.1} parent=0
    #allocation3 [shape = 'u8[32768]{0}', space=vmem, size = 0x8000, scoped, tag = 'input window, operand 1, single buffered']
    #allocation4 [shape = 's32[1]{0}', space=sflag, size = 0x4, scoped, tag = 'scoped memory for tpu_custom_call.1']
    #allocation5 [shape = 's32[1]{0}', space=sflag, size = 0x4, scoped, tag = 'scoped memory for tpu_custom_call.1']
    #allocation6 [shape = 'u8[1024]{0}', space=vmem, size = 0x400, scoped, tag = 'input window, operand 2, single buffered']
    #allocation7 [shape = 's32[1]{0}', space=sflag, size = 0x4, scoped, tag = 'scoped memory for tpu_custom_call.1']
    #allocation8 [shape = 'u8[512]{0}', space=vmem, size = 0x400, scoped, tag = 'output window, operand 0, single buffered']
    %10 = vsyncpa [#allocation4], 0
    %11 = vsyncpa [#allocation7], 0
    %12 = vsyncpa [#allocation5], 0
    // Predicated region
    $region2: #{tpu_custom_call.1} parent=1 // pred_check
      _
    $region3: #{tpu_custom_call.1} parent=1 // pred_check_branch
      %14 = sbr.rel (0) target = $region5
    $region4: #{tpu_custom_call.1} parent=1 // pred_region
      _
    $region5: #{tpu_custom_call.1} parent=1 // pred_fallthru
      _
    // Predicated region
    $region6: #{tpu_custom_call.1} parent=1 // pred_check
      _
    $region7: #{tpu_custom_call.1} parent=1 // pred_check_branch
      %16 = sbr.rel (0) target = $region9
    $region8: #{tpu_custom_call.1} parent=1 // pred_region
      %18 = vsyncadd [#allocation4], 0
      %s19 = sshll.u32 %s1, 4
      %s20 = int_to_ptr.hbm [resolvable:$true] %s19
      %s21 = sshll.u32 [#allocation3], 4
      %s22 = int_to_ptr.vmem [resolvable:$true] %s21
      %27 = dma.hbm_to_vmem [thread:$0]  %s20, 1024, %s22, [#allocation4], 64, 64, 4
    $region9: #{tpu_custom_call.1} parent=1 // pred_fallthru
      _
    // Predicated region
    $region10: #{tpu_custom_call.1} parent=1 // pred_check
      _
    $region11: #{tpu_custom_call.1} parent=1 // pred_check_branch
      %29 = sbr.rel (0) target = $region13
    $region12: #{tpu_custom_call.1} parent=1 // pred_region
      %31 = vsyncadd [#allocation7], 0
      %s33 = sshll.u32 %s2, 4
      %s34 = int_to_ptr.hbm [resolvable:$true] %s33
      %s35 = sshll.u32 [#allocation6], 4
      %s36 = int_to_ptr.vmem [resolvable:$true] %s35
      %38 = dma.hbm_to_vmem [thread:$0]  %s34, 32, %s36, [#allocation7]
    $region13: #{tpu_custom_call.1} parent=1 // pred_fallthru
      _
    // Predicated region
    $region14: #{tpu_custom_call.1} parent=1 // pred_check
      _
    $region15: #{tpu_custom_call.1} parent=1 // pred_check_branch
      %40 = sbr.rel (0) target = $region17
    $region16: #{tpu_custom_call.1} parent=1 // pred_region
      _
    $region17: #{tpu_custom_call.1} parent=1 // pred_fallthru
      _
    // Predicated region
    $region18: #{tpu_custom_call.1} parent=1 // pred_check
      _
    $region19: #{tpu_custom_call.1} parent=1 // pred_check_branch
      %42 = sbr.rel (0) target = $region21
    $region20: #{tpu_custom_call.1} parent=1 // pred_region
      %44 = dma.done [#allocation4], 1024
    $region21: #{tpu_custom_call.1} parent=1 // pred_fallthru
      _
    // Predicated region
    $region22: #{tpu_custom_call.1} parent=1 // pred_check
      _
    $region23: #{tpu_custom_call.1} parent=1 // pred_check_branch
      %46 = sbr.rel (0) target = $region25
    $region24: #{tpu_custom_call.1} parent=1 // pred_region
      %48 = dma.done [#allocation7], 32
    $region25: #{tpu_custom_call.1} parent=1 // pred_fallthru
      _
    %v49 = vld [vmem:[%s0] sm:$0x3]
    %v50 = vpack.c.bf16 %v49, %v49
    %v51 = vld [vmem:[#allocation3] sm:$0xf]
    %v52 = vld [vmem:[#allocation3 + $0x4] sm:$0xf]
    %v53 = vld [vmem:[#allocation3 + $0x8] sm:$0xf]
    %v54 = vld [vmem:[#allocation3 + $0xc] sm:$0xf]
    %v55 = vld [vmem:[#allocation3 + $0x10] sm:$0xf]
    %v56 = vld [vmem:[#allocation3 + $0x14] sm:$0xf]
    %v57 = vld [vmem:[#allocation3 + $0x18] sm:$0xf]
    %v58 = vld [vmem:[#allocation3 + $0x1c] sm:$0xf]
    %v59 = vld [vmem:[#allocation3 + $0x20] sm:$0xf]
    %v60 = vld [vmem:[#allocation3 + $0x24] sm:$0xf]
    %v61 = vld [vmem:[#allocation3 + $0x28] sm:$0xf]
    %v62 = vld [vmem:[#allocation3 + $0x2c] sm:$0xf]
    %v63 = vld [vmem:[#allocation3 + $0x30] sm:$0xf]
    %v64 = vld [vmem:[#allocation3 + $0x34] sm:$0xf]
    %v65 = vld [vmem:[#allocation3 + $0x38] sm:$0xf]
    %v66 = vld [vmem:[#allocation3 + $0x3c] sm:$0xf]
    %v67 = vld [vmem:[#allocation6] sm:$0x1]
    %v68 = vperm.slane %v67, 0
    %v85 = vunpack.c.l.b16 %v51
    %v86 = vunpack.c.l.b16 %v52
    %v87 = vunpack.c.l.b16 %v53
    %v88 = vunpack.c.l.b16 %v54
    %v89 = vunpack.c.l.b16 %v55
    %v90 = vunpack.c.l.b16 %v56
    %v91 = vunpack.c.l.b16 %v57
    %v92 = vunpack.c.l.b16 %v58
    %v93 = vunpack.c.l.b16 %v59
    %v94 = vunpack.c.l.b16 %v60
    %v95 = vunpack.c.l.b16 %v61
    %v96 = vunpack.c.l.b16 %v62
    %v97 = vunpack.c.l.b16 %v63
    %v98 = vunpack.c.l.b16 %v64
    %v99 = vunpack.c.l.b16 %v65
    %v100 = vunpack.c.l.b16 %v66
    %v101 = vpack.c.b16 %v86, %v85
    %v102 = vpack.c.b16 %v88, %v87
    %v103 = vpack.c.b16 %v90, %v89
    %v104 = vpack.c.b16 %v92, %v91
    %v105 = vpack.c.b16 %v94, %v93
    %v106 = vpack.c.b16 %v96, %v95
    %v107 = vpack.c.b16 %v98, %v97
    %v108 = vpack.c.b16 %v100, %v99
    %117 = vmatpush.bf16.msra.mxu0 %v108
    %118 = vmatpush.bf16.msra.mxu0 %v107
    %119 = vmatpush.bf16.msra.mxu0 %v106
    %120 = vmatpush.bf16.msra.mxu0 %v105
    %121 = vmatpush.bf16.msra.mxu0 %v104
    %122 = vmatpush.bf16.msra.mxu0 %v103
    %123 = vmatpush.bf16.msra.mxu0 %v102
    %124 = vmatpush.bf16.msra.mxu0 %v101
    %125 = vmatmul.bf16.gmra.mxu0 %v50
    %v126 = vpop.f32.mrf.mxu0
    %v127 = vadd.f32 %v68, %v126
    %v128 = vpop.f32.mrf.mxu0
    %129 = vdwg.mxu0
    %v130 = vmax.f32 %v127, 0.0
    %v131 = vld [vmem:[#allocation6 + $0x1] sm:$0x1]
    %v132 = vperm.slane %v131, 0
    %v133 = vmul.f32 %v130, %v132
    %vm134 = vcmask 1041408
    %v135 = vsel %vm134, %v133, 0.0
    %136 = vadd.xlane.f32.xlu0 %v135
    %v137 = vpop.xlane.xlu0 %136
    %s138 = sld [smem:[#allocation2]]
    %v139 = vstv %s138
    %v140 = vadd.f32 %v137, %v139
    %v142 = vlaneseq
    %v143 = vand.u32 %v142, 127
    %v144 = vperm.slane %v140, %v143
    %vm146 = vcmask 8192
    %147 = vst.msk [vmem:[#allocation8] sm:$0x1] %vm146, %v144
    // Predicated region
    $region26: #{tpu_custom_call.1} parent=1 // pred_check
      _
    $region27: #{tpu_custom_call.1} parent=1 // pred_check_branch
      %149 = sbr.rel (0) target = $region29
    $region28: #{tpu_custom_call.1} parent=1 // pred_region
      %151 = vsyncadd [#allocation5], 0
      %s153 = sshll.u32 [#allocation8], 4
      %s154 = int_to_ptr.vmem [resolvable:$true] %s153
      %s155 = sshll.u32 %s4, 4
      %s156 = int_to_ptr.hbm [resolvable:$true] %s155
      %158 = dma.vmem_to_hbm [thread:$0]  %s154, 16, %s156, [#allocation5]
    $region29: #{tpu_custom_call.1} parent=1 // pred_fallthru
      _
    // Predicated region
    $region30: #{tpu_custom_call.1} parent=1 // pred_check
      _
    $region31: #{tpu_custom_call.1} parent=1 // pred_check_branch
      %160 = sbr.rel (0) target = $region33
    $region32: #{tpu_custom_call.1} parent=1 // pred_region
      %162 = dma.done [#allocation5], 16
    $region33: #{tpu_custom_call.1} parent=1 // pred_fallthru
      _
    %163 = vsyncpa [#allocation4], 1
    %164 = vsyncpa [#allocation7], 1
    %165 = vsyncpa [#allocation5], 1

</llo_original>
